<compile_context>
chip_gen: v7x
topology: tpu7x:2x2x1
jax: 0.10.0
libtpu: 0.0.40
codegen_flags: <defaults>
</compile_context>

<pallas_src>
import jax
import jax.numpy as jnp
from jax.experimental import pallas as pl
from jax.experimental.pallas import tpu as pltpu

# logical sizes
D_IN, H1, H2, D_OUT = 16, 8, 4, 1
# layout sizes
LANES = 128        # lane (last-dim) width used for the padded weight blocks
OUT_LANES = 8      # narrow output: 32 B/row written back instead of 512 B/row
MAX_BLOCK_B = 512  # batch-tile cap; large batches get >= 2 tiles (v7x megacore)


def _round_up(n, m):
    return pl.cdiv(n, m) * m


def _sublane_tile(dtype):
    # minimum second-minor tile: 8 rows for 4-byte dtypes, 16 for bf16, 32 for int8
    return 8 * (4 // jnp.dtype(dtype).itemsize)


def _mlp_kernel(x_ref, w1_ref, w2_ref, bw_ref, o_ref):
    """One batch tile of the 16 -> 8 -> 4 -> 1 MLP.

    x_ref : (TB, 16)   activations (weight dtype)
    w1_ref: (16, 128)  fc1 weight transposed; lanes [0:8) useful, rest 0
    w2_ref: (128, 128) fc2 weight transposed; rows [0:8) x lanes [0:4) useful, rest 0
    bw_ref: (8, 128)   f32: row0 = b1, row1 = b2, row2 = w3 row, row3[0] = b3
    o_ref : (TB, 8)    f32; the scalar value broadcast across the 8 lanes
    """
    wdt = w1_ref.dtype
    b = bw_ref[...]                                              # (8, 128) f32, one vreg

    # fc1 + ReLU: MXU dot, f32 accumulate, VPU bias add.
    h1 = jnp.dot(x_ref[...], w1_ref[...], preferred_element_type=jnp.float32)
    h1 = jnp.maximum(h1 + b[0], 0.0)                             # (TB, 128); lanes >= 8 stay 0

    # fc2 + ReLU: contract over all 128 lanes (lanes >= 8 of h1 are exactly 0,
    # and rows >= 8 of w2 are 0, so the zero padding contributes nothing).
    h2 = jnp.dot(h1.astype(wdt), w2_ref[...], preferred_element_type=jnp.float32)
    h2 = jnp.maximum(h2 + b[1], 0.0)                             # (TB, 128); lanes >= 4 stay 0

    # fc3 on VPU + XLU: elementwise mul by the w3 row, lane reduction, + b3.
    val = jnp.sum(h2 * b[2], axis=-1, keepdims=True) + b[3:4, 0:1]   # (TB, 1)
    o_ref[...] = jnp.broadcast_to(val, o_ref.shape).astype(o_ref.dtype)


def prepare_params(params, dtype=jnp.float32):
    """One-time packing of weights/biases.  Call once and reuse per forward call.

    Returns (w1p, w2p, bw):
      w1p: (16, 128)  dtype   -- w1.T in lanes [0:8)
      w2p: (128, 128) dtype   -- w2.T in rows [0:8) / lanes [0:4)
      bw : (8, 128)   float32 -- b1 row, b2 row, w3 row, b3 scalar (kept f32)
    """
    (w1, b1), (w2, b2), (w3, b3) = params
    w1p = (jnp.zeros((D_IN, LANES), jnp.float32)
           .at[:, :H1].set(jnp.asarray(w1, jnp.float32).T).astype(dtype))
    w2p = (jnp.zeros((LANES, LANES), jnp.float32)
           .at[:H1, :H2].set(jnp.asarray(w2, jnp.float32).T).astype(dtype))
    bw = jnp.zeros((8, LANES), jnp.float32)
    bw = bw.at[0, :H1].set(jnp.asarray(b1, jnp.float32))
    bw = bw.at[1, :H2].set(jnp.asarray(b2, jnp.float32))
    bw = bw.at[2, :H2].set(jnp.asarray(w3, jnp.float32).reshape(-1))
    bw = bw.at[3, 0].set(jnp.asarray(b3, jnp.float32).reshape(-1)[0])
    return (w1p, w2p, bw)


def _xla_forward(x2, packed):
    """Tiny-batch fast path: three fused XLA matmuls (no pallas_call / DMA overhead)."""
    w1p, w2p, bw = packed
    h1 = jnp.maximum(x2 @ w1p[:, :H1].astype(jnp.float32) + bw[0, :H1], 0.0)
    h2 = jnp.maximum(h1 @ w2p[:H1, :H2].astype(jnp.float32) + bw[1, :H2], 0.0)
    return h2 @ bw[2, :H2][:, None] + bw[3, 0]


def value_net_forward(x, packed, *, block_b=None, small_batch_xla=False):
    """x: (16,) or (B, 16); packed: output of prepare_params().
    Returns (B, 1) float32, matching valueNet.forward ((1, 1) for a single state)."""
    w1p, w2p, bw = packed
    wdt = w1p.dtype
    x2 = jnp.asarray(x, jnp.float32).reshape(-1, D_IN)   # .float() + unsqueeze + view(-1, 16)
    B = x2.shape[0]

    if small_batch_xla and B < 64:
        return _xla_forward(x2, packed)

    sub = _sublane_tile(wdt)                 # 8 for f32, 16 for bf16
    if block_b is None:
        block_b = min(MAX_BLOCK_B, _round_up(B, sub))
    assert block_b % sub == 0, (
        f"block_b={block_b} must be a multiple of {sub} for dtype {jnp.dtype(wdt)}")
    Bp = _round_up(B, block_b)

    # Cheap per-call pad to a whole number of batch tiles; cast at MXU input only.
    xp = jnp.zeros((Bp, D_IN), wdt).at[:B].set(x2.astype(wdt))

    out_padded = pl.pallas_call(
        _mlp_kernel,
        out_shape=jax.ShapeDtypeStruct((Bp, OUT_LANES), jnp.float32),
        grid=(Bp // block_b,),
        in_specs=[
            pl.BlockSpec((block_b, D_IN), lambda i: (i, 0)),    # x: tiled over batch, 64 B/row
            pl.BlockSpec((D_IN, LANES), lambda i: (0, 0)),      # weights: constant index_map
            pl.BlockSpec((LANES, LANES), lambda i: (0, 0)),     #   -> DMA'd once, VMEM-resident
            pl.BlockSpec((8, LANES), lambda i: (0, 0)),
        ],
        out_specs=pl.BlockSpec((block_b, OUT_LANES), lambda i: (i, 0)),
        compiler_params=pltpu.CompilerParams(
            dimension_semantics=("parallel",)),                 # v7x: shard tiles over 2 TCs
    )(xp, w1p, w2p, bw)

    return out_padded[:B, :D_OUT]


def init_params(key):
    """Deterministic PyTorch-Linear-style init: U(-1/sqrt(fan_in), 1/sqrt(fan_in))."""
    def linear(key, out_f, in_f):
        kw, kb = jax.random.split(key)
        bound = 1.0 / jnp.sqrt(in_f)
        w = jax.random.uniform(kw, (out_f, in_f), jnp.float32, -bound, bound)
        b = jax.random.uniform(kb, (out_f,), jnp.float32, -bound, bound)
        return w, b

    k1, k2, k3 = jax.random.split(key, 3)
    return (linear(k1, H1, D_IN), linear(k2, H2, H1), linear(k3, D_OUT, H2))


def reference_forward(x, params):
    (w1, b1), (w2, b2), (w3, b3) = params
    x2 = jnp.asarray(x, jnp.float32).reshape(-1, D_IN)
    h1 = jnp.maximum(x2 @ w1.T + b1, 0.0)
    h2 = jnp.maximum(h1 @ w2.T + b2, 0.0)
    return h2 @ w3.T + b3


if __name__ == "__main__":
    key = jax.random.PRNGKey(0)
    kx, kb, kp = jax.random.split(key, 3)
    params = init_params(kp)

    # One-time packing (cached); f32 preserves the module's exact semantics.
    packed_f32 = prepare_params(params, dtype=jnp.float32)

    # --- batch-1 path: exact semantics of valueNet.forward on a single state ---
    x = jax.random.normal(kx, (D_IN,), jnp.float32)
    out = jax.block_until_ready(value_net_forward(x, packed_f32))
    ref = reference_forward(x, params)
    assert out.shape == (1, 1)
    assert jnp.allclose(out, ref, atol=1e-4, rtol=1e-4), (out, ref)

    # --- batched path: grid over batch tiles, weights DMA'd once ---
    xb = jax.random.normal(kb, (32, D_IN), jnp.float32)
    outb = jax.block_until_ready(value_net_forward(xb, packed_f32))
    refb = reference_forward(xb, params)
    assert outb.shape == (32, 1)
    assert jnp.allclose(outb, refb, atol=1e-4, rtol=1e-4), (outb, refb)

    # --- bf16 packed weights + bf16 activations: half the MXU-input DMA bytes,
    #     f32 accumulation and f32 biases; 16-row sublane tiling enforced ---
    packed_bf16 = prepare_params(params, dtype=jnp.bfloat16)
    outb16 = jax.block_until_ready(value_net_forward(xb, packed_bf16))
    assert outb16.shape == (32, 1)
    assert jnp.allclose(outb16, refb, atol=5e-2, rtol=5e-2), (outb16, refb)

    # --- tiny-batch XLA fast path (skips the pallas_call boundary entirely) ---
    out_fast = jax.block_until_ready(
        value_net_forward(x, packed_f32, small_batch_xla=True))
    assert jnp.allclose(out_fast, ref, atol=1e-4, rtol=1e-4), (out_fast, ref)

    print("KERNEL_OK")
</pallas_src>

<mosaic_0001>
module attributes {stable_mosaic.version = 11 : i64} {
  func.func @_mlp_kernel(%arg0: i32, %arg1: memref<8x16xf32, #tpu.memory_space<vmem>>, %arg2: memref<16x128xf32, #tpu.memory_space<vmem>>, %arg3: memref<128x128xf32, #tpu.memory_space<vmem>>, %arg4: memref<8x128xf32, #tpu.memory_space<vmem>>, %arg5: memref<8x8xf32, #tpu.memory_space<vmem>>) attributes {dimension_semantics = [#tpu.dimension_semantics<parallel>], iteration_bounds = array<i64: 1>, scalar_prefetch = 0 : i64, scratch_operands = 0 : i64, tpu.core_type = #tpu.core_type<tc>, window_params = [{transform_indices = @transform_0, window_bounds = array<i64: 8, 16>}, {pipeline_mode = #tpu.pipeline_mode<synchronous>, transform_indices = @transform_1, window_bounds = array<i64: 16, 128>}, {pipeline_mode = #tpu.pipeline_mode<synchronous>, transform_indices = @transform_2, window_bounds = array<i64: 128, 128>}, {pipeline_mode = #tpu.pipeline_mode<synchronous>, transform_indices = @transform_3, window_bounds = array<i64: 8, 128>}, {transform_indices = @transform_4, window_bounds = array<i64: 8, 8>}]} {
    %c0 = arith.constant 0 : index
    %c0_0 = arith.constant 0 : index
    %0 = vector.load %arg4[%c0, %c0_0] : memref<8x128xf32, #tpu.memory_space<vmem>>, vector<8x128xf32>
    %c0_1 = arith.constant 0 : index
    %c0_2 = arith.constant 0 : index
    %1 = vector.load %arg1[%c0_1, %c0_2] : memref<8x16xf32, #tpu.memory_space<vmem>>, vector<8x16xf32>
    %c0_3 = arith.constant 0 : index
    %c0_4 = arith.constant 0 : index
    %2 = vector.load %arg2[%c0_3, %c0_4] : memref<16x128xf32, #tpu.memory_space<vmem>>, vector<16x128xf32>
    %cst = arith.constant dense<0.000000e+00> : vector<8x128xf32>
    %3 = tpu.matmul %1, %2, %cst {dimension_numbers = #tpu.dot_dimension_numbers<[1], [0], [0], [1], [0, 0, 1, 1], [], []>} : vector<8x16xf32>, vector<16x128xf32>, vector<8x128xf32> -> vector<8x128xf32>
    %4 = vector.extract_strided_slice %0 {offsets = [0, 0], sizes = [1, 128], strides = [1, 1]} : vector<8x128xf32> to vector<1x128xf32>
    %5 = vector.shape_cast %4 : vector<1x128xf32> to vector<128xf32>
    %6 = vector.shape_cast %5 : vector<128xf32> to vector<1x128xf32>
    %7 = vector.broadcast %6 : vector<1x128xf32> to vector<8x128xf32>
    %8 = arith.addf %3, %7 : vector<8x128xf32>
    %cst_5 = arith.constant 0.000000e+00 : f32
    %9 = vector.broadcast %cst_5 : f32 to vector<8x128xf32>
    %10 = arith.maximumf %8, %9 : vector<8x128xf32>
    %c0_6 = arith.constant 0 : index
    %c0_7 = arith.constant 0 : index
    %11 = vector.load %arg3[%c0_6, %c0_7] : memref<128x128xf32, #tpu.memory_space<vmem>>, vector<128x128xf32>
    %cst_8 = arith.constant dense<0.000000e+00> : vector<8x128xf32>
    %12 = tpu.matmul %10, %11, %cst_8 {dimension_numbers = #tpu.dot_dimension_numbers<[1], [0], [0], [1], [0, 0, 1, 1], [], []>} : vector<8x128xf32>, vector<128x128xf32>, vector<8x128xf32> -> vector<8x128xf32>
    %13 = vector.extract_strided_slice %0 {offsets = [1, 0], sizes = [1, 128], strides = [1, 1]} : vector<8x128xf32> to vector<1x128xf32>
    %14 = vector.shape_cast %13 : vector<1x128xf32> to vector<128xf32>
    %15 = vector.shape_cast %14 : vector<128xf32> to vector<1x128xf32>
    %16 = vector.broadcast %15 : vector<1x128xf32> to vector<8x128xf32>
    %17 = arith.addf %12, %16 : vector<8x128xf32>
    %cst_9 = arith.constant 0.000000e+00 : f32
    %18 = vector.broadcast %cst_9 : f32 to vector<8x128xf32>
    %19 = arith.maximumf %17, %18 : vector<8x128xf32>
    %20 = vector.extract_strided_slice %0 {offsets = [2, 0], sizes = [1, 128], strides = [1, 1]} : vector<8x128xf32> to vector<1x128xf32>
    %21 = vector.shape_cast %20 : vector<1x128xf32> to vector<128xf32>
    %22 = vector.shape_cast %21 : vector<128xf32> to vector<1x128xf32>
    %23 = vector.broadcast %22 : vector<1x128xf32> to vector<8x128xf32>
    %24 = arith.mulf %19, %23 : vector<8x128xf32>
    %cst_10 = arith.constant dense<0.000000e+00> : vector<8xf32>
    %25 = vector.multi_reduction <add>, %24, %cst_10 [1] : vector<8x128xf32> to vector<8xf32>
    %26 = vector.shape_cast %25 : vector<8xf32> to vector<8x1xf32>
    %27 = vector.extract_strided_slice %0 {offsets = [3, 0], sizes = [1, 1], strides = [1, 1]} : vector<8x128xf32> to vector<1x1xf32>
    %28 = vector.broadcast %27 : vector<1x1xf32> to vector<8x1xf32>
    %29 = arith.addf %26, %28 : vector<8x1xf32>
    %30 = vector.shape_cast %29 : vector<8x1xf32> to vector<8x1xf32>
    %31 = vector.broadcast %30 : vector<8x1xf32> to vector<8x8xf32>
    %c0_11 = arith.constant 0 : index
    %c0_12 = arith.constant 0 : index
    %32 = vector.load %arg5[%c0_11, %c0_12] : memref<8x8xf32, #tpu.memory_space<vmem>>, vector<8x8xf32>
    tpu.vector_store %arg5[%c0_11, %c0_12], %31 {strides = array<i32>} : memref<8x8xf32, #tpu.memory_space<vmem>>, vector<8x8xf32>,
    return
  }
  func.func @transform_0(%arg0: i32) -> (i32, i32) {
    %c0_i32 = arith.constant 0 : i32
    %c0_i32_0 = arith.constant 0 : i32
    return %arg0, %c0_i32 : i32, i32
  }
  func.func @transform_1(%arg0: i32) -> (i32, i32) {
    %c0_i32 = arith.constant 0 : i32
    %c0_i32_0 = arith.constant 0 : i32
    %c0_i32_1 = arith.constant 0 : i32
    return %c0_i32, %c0_i32_0 : i32, i32
  }
  func.func @transform_2(%arg0: i32) -> (i32, i32) {
    %c0_i32 = arith.constant 0 : i32
    %c0_i32_0 = arith.constant 0 : i32
    %c0_i32_1 = arith.constant 0 : i32
    return %c0_i32, %c0_i32_0 : i32, i32
  }
  func.func @transform_3(%arg0: i32) -> (i32, i32) {
    %c0_i32 = arith.constant 0 : i32
    %c0_i32_0 = arith.constant 0 : i32
    %c0_i32_1 = arith.constant 0 : i32
    return %c0_i32, %c0_i32_0 : i32, i32
  }
  func.func @transform_4(%arg0: i32) -> (i32, i32) {
    %c0_i32 = arith.constant 0 : i32
    %c0_i32_0 = arith.constant 0 : i32
    return %arg0, %c0_i32 : i32, i32
  }
}

</mosaic_0001>

<llo_original>
// kernel: tpu_custom_call.1
$region0: #{tpu_custom_call.1}
  #allocation0 [shape = 'u32[]', space=smem, size = 0x4, offset = 0x4, fixed_abs, tag = 'smem constant byte address 0x4 - core index']
  #allocation1 [shape = 'u32[144,128]{1,0:T(1,128)}', space=vmem, size = 0x12000, scoped, tag = 'internal scratch']
  %s0 = inlined_call_operand.hbm [shape: f32[8,16], index: 0, kind: input, shape index: {}]
  %s1 = inlined_call_operand.hbm [shape: f32[16,128], index: 1, kind: input, shape index: {}]
  %s2 = inlined_call_operand.hbm [shape: f32[128,128], index: 2, kind: input, shape index: {}]
  %s3 = inlined_call_operand.vmem [shape: f32[8,128], index: 3, kind: input, shape index: {}]
  %s4 = inlined_call_operand.hbm [shape: f32[8,8], index: 4, kind: output, shape index: {}]
  %s5 = sld [smem:[#allocation0]]
  $region38: #{tpu_custom_call.1} parent=0
    _
  %s7 = ssub.s32 1, %s5
  %s8 = scalar_select 0, %s7, %s5
  $region1: #{tpu_custom_call.1} parent=0
    #allocation2 [shape = 'u8[4096]{0}', space=vmem, size = 0x1000, scoped, tag = 'input window, operand 0, single buffered']
    #allocation3 [shape = 's32[1]{0}', space=sflag, size = 0x4, scoped, tag = 'scoped memory for tpu_custom_call.1']
    #allocation4 [shape = 's32[1]{0}', space=sflag, size = 0x4, scoped, tag = 'scoped memory for tpu_custom_call.1']
    #allocation5 [shape = 'u8[8192]{0}', space=vmem, size = 0x2000, scoped, tag = 'input window, operand 1, single buffered']
    #allocation6 [shape = 's32[1]{0}', space=sflag, size = 0x4, scoped, tag = 'scoped memory for tpu_custom_call.1']
    #allocation7 [shape = 'u8[65536]{0}', space=vmem, size = 0x10000, scoped, tag = 'input window, operand 2, single buffered']
    #allocation8 [shape = 'u8[4096]{0}', space=vmem, size = 0x1000, scoped, tag = 'output window, operand 0, single buffered']
    %9 = vsyncpa [#allocation3], 0
    %10 = vsyncpa [#allocation6], 0
    %11 = vsyncpa [#allocation4], 0
    // Predicated region
    $region2: #{tpu_custom_call.1} parent=1 // pred_check
      _
    $region3: #{tpu_custom_call.1} parent=1 // pred_check_branch
      %13 = sbr.rel (0) target = $region5
    $region4: #{tpu_custom_call.1} parent=1 // pred_region
      %s15 = ssub.s32 128, 128
      %16 = vsyncadd [#allocation3], %s15
      %s18 = sshll.u32 [#allocation2], 4
      %s19 = int_to_ptr.vmem [resolvable:$true] %s18
      %21 = dma.hbm_to_vmem [thread:$0]  %s0, 128, %s19, [#allocation3]
    $region5: #{tpu_custom_call.1} parent=1 // pred_fallthru
      _
    // Predicated region
    $region6: #{tpu_custom_call.1} parent=1 // pred_check
      _
    $region7: #{tpu_custom_call.1} parent=1 // pred_check_branch
      %23 = sbr.rel (0) target = $region9
    $region8: #{tpu_custom_call.1} parent=1 // pred_region
      %s25 = ssub.s32 256, 256
      %26 = vsyncadd [#allocation6], %s25
      %s27 = sshll.u32 [#allocation5], 4
      %s28 = int_to_ptr.vmem [resolvable:$true] %s27
      %33 = dma.hbm_to_vmem [thread:$0]  %s1, 256, %s28, [#allocation6], 128, 128, 8
    $region9: #{tpu_custom_call.1} parent=1 // pred_fallthru
      _
    // Predicated region
    $region10: #{tpu_custom_call.1} parent=1 // pred_check
      _
    $region11: #{tpu_custom_call.1} parent=1 // pred_check_branch
      %35 = sbr.rel (0) target = $region13
    $region12: #{tpu_custom_call.1} parent=1 // pred_region
      %s37 = ssub.s32 2048, 2048
      %38 = vsyncadd [#allocation6], %s37
      %s39 = sshll.u32 [#allocation7], 4
      %s40 = int_to_ptr.vmem [resolvable:$true] %s39
      %45 = dma.hbm_to_vmem [thread:$0]  %s2, 2048, %s40, [#allocation6], 128, 128, 8
    $region13: #{tpu_custom_call.1} parent=1 // pred_fallthru
      _
    // Predicated region
    $region14: #{tpu_custom_call.1} parent=1 // pred_check
      _
    $region15: #{tpu_custom_call.1} parent=1 // pred_check_branch
      %47 = sbr.rel (0) target = $region17
    $region16: #{tpu_custom_call.1} parent=1 // pred_region
      _
    $region17: #{tpu_custom_call.1} parent=1 // pred_fallthru
      _
    // Predicated region
    $region18: #{tpu_custom_call.1} parent=1 // pred_check
      _
    $region19: #{tpu_custom_call.1} parent=1 // pred_check_branch
      %49 = sbr.rel (0) target = $region21
    $region20: #{tpu_custom_call.1} parent=1 // pred_region
      %50 = dma.done [#allocation3], 128
    $region21: #{tpu_custom_call.1} parent=1 // pred_fallthru
      _
    // Predicated region
    $region22: #{tpu_custom_call.1} parent=1 // pred_check
      _
    $region23: #{tpu_custom_call.1} parent=1 // pred_check_branch
      %52 = sbr.rel (0) target = $region25
    $region24: #{tpu_custom_call.1} parent=1 // pred_region
      %53 = dma.done [#allocation6], 256
    $region25: #{tpu_custom_call.1} parent=1 // pred_fallthru
      _
    // Predicated region
    $region26: #{tpu_custom_call.1} parent=1 // pred_check
      _
    $region27: #{tpu_custom_call.1} parent=1 // pred_check_branch
      %55 = sbr.rel (0) target = $region29
    $region28: #{tpu_custom_call.1} parent=1 // pred_region
      %56 = dma.done [#allocation6], 2048
    $region29: #{tpu_custom_call.1} parent=1 // pred_fallthru
      _
    %v57 = vld [vmem:[%s3] sm:$0xff]
    %v58 = vld [vmem:[#allocation2] sm:$0xff]
    %v59 = vld [vmem:[#allocation5] sm:$0xff]
    %v60 = vld [vmem:[#allocation5 + $0x8] sm:$0xff]
    %v61 = vlaneseq
    %v62 = vshrl.u32 %v61, 7
    %v63 = vsub.s32 0, %v62
    %v64 = vrot.slane %v57, %v63
    %vm65 = vcmask 130048
    %v67 = vsel %vm65, %v58, 0
    %69 = vmatprep.subr.mxu0 0.0
    %70 = vmatpush1.msra.mxu0 %v59
    %71 = vmatprep.subr.mxu0 0.0
    %72 = vmatpush1.msra.mxu0 %v60
    %73 = vmatprep.subr.mxu0 0.0
    %74 = vmatpush1.msra.mxu0 0.0
    %75 = vmatprep.subr.mxu0 0.0
    %76 = vmatpush1.msra.mxu0 0.0
    %77 = vmatprep.subr.mxu0 0.0
    %78 = vmatpush1.msra.mxu0 0.0
    %79 = vmatprep.subr.mxu0 0.0
    %80 = vmatpush1.msra.mxu0 0.0
    %81 = vmatprep.subr.mxu0 0.0
    %82 = vmatpush1.msra.mxu0 0.0
    %83 = vmatprep.subr.mxu0 0.0
    %84 = vmatpush1.msra.mxu0 0.0
    %85 = vmatprep.subr.mxu0 0.0
    %86 = vmatpush1.msra.mxu0 0.0
    %87 = vmatprep.subr.mxu0 0.0
    %88 = vmatpush1.msra.mxu0 0.0
    %89 = vmatprep.subr.mxu0 0.0
    %90 = vmatpush1.msra.mxu0 0.0
    %91 = vmatprep.subr.mxu0 0.0
    %92 = vmatpush1.msra.mxu0 0.0
    %93 = vmatprep.subr.mxu0 0.0
    %94 = vmatpush1.msra.mxu0 0.0
    %95 = vmatprep.subr.mxu0 0.0
    %96 = vmatpush1.msra.mxu0 0.0
    %97 = vmatprep.subr.mxu0 0.0
    %98 = vmatpush1.msra.mxu0 0.0
    %99 = vmatprep.subr.mxu0 0.0
    %100 = vmatpush1.msra.mxu0 0.0
    %101 = vmatprep.subr.mxu0 0.0
    %102 = vmatpush1.msra.mxu0 0.0
    %103 = vmatprep.subr.mxu0 0.0
    %104 = vmatpush1.msra.mxu0 0.0
    %105 = vmatprep.subr.mxu0 0.0
    %106 = vmatpush1.msra.mxu0 0.0
    %107 = vmatprep.subr.mxu0 0.0
    %108 = vmatpush1.msra.mxu0 0.0
    %109 = vmatprep.subr.mxu0 0.0
    %110 = vmatpush1.msra.mxu0 0.0
    %111 = vmatprep.subr.mxu0 0.0
    %112 = vmatpush1.msra.mxu0 0.0
    %113 = vmatprep.subr.mxu0 0.0
    %114 = vmatpush1.msra.mxu0 0.0
    %115 = vmatprep.subr.mxu0 0.0
    %116 = vmatpush1.msra.mxu0 0.0
    %117 = vmatprep.subr.mxu0 0.0
    %118 = vmatpush1.msra.mxu0 0.0
    %119 = vmatprep.subr.mxu0 0.0
    %120 = vmatpush1.msra.mxu0 0.0
    %121 = vmatprep.subr.mxu0 0.0
    %122 = vmatpush1.msra.mxu0 0.0
    %123 = vmatprep.subr.mxu0 0.0
    %124 = vmatpush1.msra.mxu0 0.0
    %125 = vmatprep.subr.mxu0 0.0
    %126 = vmatpush1.msra.mxu0 0.0
    %127 = vmatprep.subr.mxu0 0.0
    %128 = vmatpush1.msra.mxu0 0.0
    %129 = vmatprep.subr.mxu0 0.0
    %130 = vmatpush1.msra.mxu0 0.0
    %131 = vmatprep.subr.mxu0 0.0
    %132 = vmatpush1.msra.mxu0 0.0
    %133 = vmatprep.mubr.f32.mxu0 0.0
    %134 = vmatmul.mubr.f32.gmra.mrb[0].mxu0 %v67
    %v135 = vpop.f32.mrb[0].mxu0
    %v136 = vadd.f32 %v64, %v135
    %v137 = vpop.f32.mrb[0].mxu0
    %138 = vdwg.mxu0
    %v139 = vmax.f32 %v136, 0.0
    %v140 = vld [vmem:[#allocation7] sm:$0xff]
    %v141 = vld [vmem:[#allocation7 + $0x8] sm:$0xff]
    %v142 = vld [vmem:[#allocation7 + $0x10] sm:$0xff]
    %v143 = vld [vmem:[#allocation7 + $0x18] sm:$0xff]
    %v144 = vld [vmem:[#allocation7 + $0x20] sm:$0xff]
    %v145 = vld [vmem:[#allocation7 + $0x28] sm:$0xff]
    %v146 = vld [vmem:[#allocation7 + $0x30] sm:$0xff]
    %v147 = vld [vmem:[#allocation7 + $0x38] sm:$0xff]
    %v148 = vld [vmem:[#allocation7 + $0x40] sm:$0xff]
    %v149 = vld [vmem:[#allocation7 + $0x48] sm:$0xff]
    %v150 = vld [vmem:[#allocation7 + $0x50] sm:$0xff]
    %v151 = vld [vmem:[#allocation7 + $0x58] sm:$0xff]
    %v152 = vld [vmem:[#allocation7 + $0x60] sm:$0xff]
    %v153 = vld [vmem:[#allocation7 + $0x68] sm:$0xff]
    %v154 = vld [vmem:[#allocation7 + $0x70] sm:$0xff]
    %v155 = vld [vmem:[#allocation7 + $0x78] sm:$0xff]
    %v156 = vlaneseq
    %v157 = vshrl.u32 %v156, 7
    %v158 = vsub.s32 1, %v157
    %v159 = vrot.slane %v57, %v158
    %160 = vmatprep.subr.mxu0 0.0
    %161 = vmatpush1.msra.mxu0 %v140
    %162 = vmatprep.subr.mxu0 0.0
    %163 = vmatpush1.msra.mxu0 %v141
    %164 = vmatprep.subr.mxu0 0.0
    %165 = vmatpush1.msra.mxu0 %v142
    %166 = vmatprep.subr.mxu0 0.0
    %167 = vmatpush1.msra.mxu0 %v143
    %168 = vmatprep.subr.mxu0 0.0
    %169 = vmatpush1.msra.mxu0 %v144
    %170 = vmatprep.subr.mxu0 0.0
    %171 = vmatpush1.msra.mxu0 %v145
    %172 = vmatprep.subr.mxu0 0.0
    %173 = vmatpush1.msra.mxu0 %v146
    %174 = vmatprep.subr.mxu0 0.0
    %175 = vmatpush1.msra.mxu0 %v147
    %176 = vmatprep.subr.mxu0 0.0
    %177 = vmatpush1.msra.mxu0 %v148
    %178 = vmatprep.subr.mxu0 0.0
    %179 = vmatpush1.msra.mxu0 %v149
    %180 = vmatprep.subr.mxu0 0.0
    %181 = vmatpush1.msra.mxu0 %v150
    %182 = vmatprep.subr.mxu0 0.0
    %183 = vmatpush1.msra.mxu0 %v151
    %184 = vmatprep.subr.mxu0 0.0
    %185 = vmatpush1.msra.mxu0 %v152
    %186 = vmatprep.subr.mxu0 0.0
    %187 = vmatpush1.msra.mxu0 %v153
    %188 = vmatprep.subr.mxu0 0.0
    %189 = vmatpush1.msra.mxu0 %v154
    %190 = vmatprep.subr.mxu0 0.0
    %191 = vmatpush1.msra.mxu0 %v155
    %192 = vmatprep.subr.mxu0 0.0
    %193 = vmatpush1.msra.mxu0 0.0
    %194 = vmatprep.subr.mxu0 0.0
    %195 = vmatpush1.msra.mxu0 0.0
    %196 = vmatprep.subr.mxu0 0.0
    %197 = vmatpush1.msra.mxu0 0.0
    %198 = vmatprep.subr.mxu0 0.0
    %199 = vmatpush1.msra.mxu0 0.0
    %200 = vmatprep.subr.mxu0 0.0
    %201 = vmatpush1.msra.mxu0 0.0
    %202 = vmatprep.subr.mxu0 0.0
    %203 = vmatpush1.msra.mxu0 0.0
    %204 = vmatprep.subr.mxu0 0.0
    %205 = vmatpush1.msra.mxu0 0.0
    %206 = vmatprep.subr.mxu0 0.0
    %207 = vmatpush1.msra.mxu0 0.0
    %208 = vmatprep.subr.mxu0 0.0
    %209 = vmatpush1.msra.mxu0 0.0
    %210 = vmatprep.subr.mxu0 0.0
    %211 = vmatpush1.msra.mxu0 0.0
    %212 = vmatprep.subr.mxu0 0.0
    %213 = vmatpush1.msra.mxu0 0.0
    %214 = vmatprep.subr.mxu0 0.0
    %215 = vmatpush1.msra.mxu0 0.0
    %216 = vmatprep.subr.mxu0 0.0
    %217 = vmatpush1.msra.mxu0 0.0
    %218 = vmatprep.subr.mxu0 0.0
    %219 = vmatpush1.msra.mxu0 0.0
    %220 = vmatprep.subr.mxu0 0.0
    %221 = vmatpush1.msra.mxu0 0.0
    %222 = vmatprep.subr.mxu0 0.0
    %223 = vmatpush1.msra.mxu0 0.0
    %224 = vmatprep.mubr.f32.mxu0 0.0
    %225 = vmatmul.mubr.f32.gmra.mrb[0].mxu0 %v139
    %v226 = vpop.f32.mrb[0].mxu0
    %v227 = vadd.f32 %v159, %v226
    %v228 = vpop.f32.mrb[0].mxu0
    %229 = vdwg.mxu0
    %v230 = vmax.f32 %v227, 0.0
    %v231 = vlaneseq
    %v232 = vshrl.u32 %v231, 7
    %v233 = vsub.s32 2, %v232
    %v234 = vrot.slane %v57, %v233
    %v235 = vmul.f32 %v230, %v234
    %236 = vadd.xlane.f32.xlu0 %v235
    %v237 = vpop.xlane.xlu0 %236
    %v238 = vlaneseq
    %v239 = vshrl.u32 %v238, 7
    %v240 = vsub.s32 3, %v239
    %v241 = vrot.slane %v57, %v240
    %v242 = vadd.f32 %v237, %v241
    %244 = vset.pattern.permute.xlu0 0
    %245 = vperm.xlu0 %244, %v242
    %v246 = vpop.permute.xlu0 %245
    %vm248 = vcmask 64512
    %249 = vst.msk [vmem:[#allocation8] sm:$0xff] %vm248, %v246
    // Predicated region
    $region30: #{tpu_custom_call.1} parent=1 // pred_check
      _
    $region31: #{tpu_custom_call.1} parent=1 // pred_check_branch
      %251 = sbr.rel (0) target = $region33
    $region32: #{tpu_custom_call.1} parent=1 // pred_region
      %s253 = ssub.s32 128, 128
      %254 = vsyncadd [#allocation4], %s253
      %s256 = sshll.u32 [#allocation8], 4
      %s257 = int_to_ptr.vmem [resolvable:$true] %s256
      %259 = dma.vmem_to_hbm [thread:$0]  %s257, 128, %s4, [#allocation4]
    $region33: #{tpu_custom_call.1} parent=1 // pred_fallthru
      _
    // Predicated region
    $region34: #{tpu_custom_call.1} parent=1 // pred_check
      _
    $region35: #{tpu_custom_call.1} parent=1 // pred_check_branch
      %261 = sbr.rel (0) target = $region37
    $region36: #{tpu_custom_call.1} parent=1 // pred_region
      %262 = dma.done [#allocation4], 128
    $region37: #{tpu_custom_call.1} parent=1 // pred_fallthru
      _
    %263 = vsyncpa [#allocation3], 1
    %264 = vsyncpa [#allocation6], 1
    %265 = vsyncpa [#allocation4], 1

</llo_original>
